<compile_context>
chip_gen: v5e
topology: v5e:2x2
jax: 0.10.0
libtpu: 0.0.40
codegen_flags: <defaults>
</compile_context>

<pallas_src>
import functools

import jax
import jax.numpy as jnp
from jax.experimental import pallas as pl
from jax.experimental.pallas import tpu as pltpu


# -----------------------------------------------------------------------------
# Tiling helpers
# -----------------------------------------------------------------------------
_TM_MAX = 512    # rows per tile (multiple of 16 so bf16 output tiles are legal)
_TN_MAX = 512    # output-channel tile (lane-dense, multiple of 128)
_TK_MAX = 1024   # reduction tile (multiple of 128)


def _round_up(x, m):
    return (x + m - 1) // m * m


def _cdiv(a, b):
    return -(-a // b)


def _plan_dim(n, tile_max, granule):
    """Pick (tile, padded) with tile a multiple of `granule`, tile <= tile_max,
    padded = num_tiles * tile >= n, minimizing zero-padding (prefer big tiles).
    Tile *count* is chosen first so max-size tiles never force huge padding."""
    n_r = _round_up(max(n, 1), granule)
    best = None
    nt = max(1, _cdiv(n_r, tile_max))
    for _ in range(128):
        tile = _round_up(_cdiv(n_r, nt), granule)
        if tile <= tile_max:
            padded = nt * tile
            if (best is None or padded < best[1]
                    or (padded == best[1] and tile > best[0])):
                best = (tile, padded)
            if padded == n_r or tile == granule:
                break
        nt += 1
    if best is None:           # fallback (unreachable in practice)
        best = (granule, n_r)
    return best


def _pad2(a, rows, cols):
    r, c = a.shape
    if r == rows and c == cols:
        return a
    return jnp.pad(a, ((0, rows - r), (0, cols - c)))


# -----------------------------------------------------------------------------
# Pallas kernel: tiled matmul + fused BN affine (+ residual) (+ ReLU) epilogue
#   residual_mode: None | "add" (pre-computed residual tile)
#                       | "downsample" (1x1-conv+BN residual computed in epilogue)
# -----------------------------------------------------------------------------
def _fused_matmul_kernel(*refs, relu, residual_mode):
    if residual_mode == "add":
        p_ref, w_ref, s_ref, b_ref, res_ref, o_ref, acc_ref = refs
    elif residual_mode == "downsample":
        p_ref, w_ref, s_ref, b_ref, xd_ref, wd_ref, bd_ref, o_ref, acc_ref = refs
    else:
        p_ref, w_ref, s_ref, b_ref, o_ref, acc_ref = refs

    k = pl.program_id(2)

    @pl.when(k == 0)
    def _init():
        acc_ref[...] = jnp.zeros_like(acc_ref)

    acc_ref[...] += jnp.dot(p_ref[...], w_ref[...],
                            preferred_element_type=jnp.float32)

    # Epilogue runs once per output tile (last K step): BN affine, residual,
    # optional ReLU -> single lane-dense store in the output dtype.
    @pl.when(k == pl.num_programs(2) - 1)
    def _finalize():
        out = acc_ref[...] * s_ref[...] + b_ref[...]
        if residual_mode == "add":
            out = out + res_ref[...].astype(jnp.float32)
        elif residual_mode == "downsample":
            res = jnp.dot(xd_ref[...], wd_ref[...],
                          preferred_element_type=jnp.float32)
            out = out + res + bd_ref[...]
        if relu:
            out = jnp.maximum(out, 0.0)
        o_ref[...] = out.astype(o_ref.dtype)


def fused_conv_bn_matmul(patches, w, scale, bias, *, relu,
                         compute_dtype=jnp.bfloat16, out_dtype=None,
                         residual=None,
                         ds_patches=None, ds_w=None, ds_bias=None):
    """out = maybe_relu((patches @ w) * scale + bias [+ residual]).

    patches: (M, K), w: (K, Nc), scale/bias: (Nc,).
    residual (optional):  (M, Nc) pre-computed residual (identity path).
    ds_patches/ds_w/ds_bias (optional): fused downsample residual
        residual = ds_patches @ ds_w + ds_bias  (BN scale already folded in ds_w).
    Returns the padded (Mp, Np) output in `out_dtype`; caller slices [:M, :Nc].
    """
    M, K = patches.shape
    Kw, Nc = w.shape
    assert K == Kw
    if out_dtype is None:
        out_dtype = jnp.float32

    tm, Mp = _plan_dim(M, _TM_MAX, 16)
    tn, Np = _plan_dim(Nc, _TN_MAX, 128)
    tk, Kp = _plan_dim(K, _TK_MAX, 128)

    # v7x megacore: if the parallel (i, j) grid collapsed to one tile but there
    # are enough rows, split M so both TensorCores get work.
    if (Mp // tm) * (Np // tn) == 1 and Mp >= 256:
        tm = _round_up(Mp // 2, 16)
        Mp = 2 * tm

    p = _pad2(patches, Mp, Kp).astype(compute_dtype)
    wm = _pad2(w, Kp, Np).astype(compute_dtype)
    s = _pad2(scale.reshape(1, -1).astype(jnp.float32), 1, Np)
    b = _pad2(bias.reshape(1, -1).astype(jnp.float32), 1, Np)

    in_specs = [
        pl.BlockSpec((tm, tk), lambda i, j, k: (i, k)),   # patches stream
        pl.BlockSpec((tk, tn), lambda i, j, k: (k, j)),   # weights stream
        pl.BlockSpec((1, tn), lambda i, j, k: (0, j)),    # BN scale slice
        pl.BlockSpec((1, tn), lambda i, j, k: (0, j)),    # BN bias slice
    ]
    args = [p, wm, s, b]

    itemsize = jnp.dtype(compute_dtype).itemsize
    flops = 2 * Mp * Kp * Np
    bytes_accessed = ((Mp * Kp + Kp * Np) * itemsize
                      + Mp * Np * jnp.dtype(out_dtype).itemsize)

    if residual is not None:
        residual_mode = "add"
        r = _pad2(residual, Mp, Np).astype(compute_dtype)
        in_specs.append(pl.BlockSpec((tm, tn), lambda i, j, k: (i, j)))
        args.append(r)
        bytes_accessed += Mp * Np * itemsize
    elif ds_patches is not None:
        residual_mode = "downsample"
        Md, Kd = ds_patches.shape
        assert Md == M and ds_w.shape == (Kd, Nc)
        Kdp = _round_up(Kd, 128)
        xd = _pad2(ds_patches, Mp, Kdp).astype(compute_dtype)
        wdm = _pad2(ds_w, Kdp, Np).astype(compute_dtype)
        bdm = _pad2(ds_bias.reshape(1, -1).astype(jnp.float32), 1, Np)
        # index_maps are independent of k, so these blocks are only DMA'd when
        # i / j actually change (Pallas skips re-copies of unchanged blocks).
        in_specs += [
            pl.BlockSpec((tm, Kdp), lambda i, j, k: (i, 0)),  # strided-x rows
            pl.BlockSpec((Kdp, tn), lambda i, j, k: (0, j)),  # 1x1 weights (folded)
            pl.BlockSpec((1, tn), lambda i, j, k: (0, j)),    # downsample BN bias
        ]
        args += [xd, wdm, bdm]
        flops += 2 * Mp * Kdp * Np
        bytes_accessed += (Mp * Kdp + Kdp * Np) * itemsize
    else:
        residual_mode = None

    grid = (Mp // tm, Np // tn, Kp // tk)
    kernel = functools.partial(_fused_matmul_kernel, relu=relu,
                               residual_mode=residual_mode)

    out = pl.pallas_call(
        kernel,
        out_shape=jax.ShapeDtypeStruct((Mp, Np), out_dtype),
        grid_spec=pltpu.PrefetchScalarGridSpec(
            num_scalar_prefetch=0,
            grid=grid,
            in_specs=in_specs,
            out_specs=pl.BlockSpec((tm, tn), lambda i, j, k: (i, j)),
            scratch_shapes=[pltpu.VMEM((tm, tn), jnp.float32)],
        ),
        compiler_params=pltpu.CompilerParams(
            dimension_semantics=("parallel", "parallel", "arbitrary"),
            # Safe on v7x's 64 MiB physical VMEM; plenty on v5e/v6e (128 MiB).
            vmem_limit_bytes=48 * 1024 * 1024,
        ),
        cost_estimate=pl.CostEstimate(flops=flops, transcendentals=0,
                                      bytes_accessed=bytes_accessed),
    )(*args)
    return out


# -----------------------------------------------------------------------------
# Plain-JAX glue: NHWC im2col, BN folding, parameter setup
# -----------------------------------------------------------------------------
def im2col_nhwc(x, k, stride, padding):
    """x: (N, H, W, C) -> patches (N*Ho*Wo, k*k*C), column order (kh, kw, c)."""
    N, H, W, C = x.shape
    Ho = (H + 2 * padding - k) // stride + 1
    Wo = (W + 2 * padding - k) // stride + 1
    xp = jnp.pad(x, ((0, 0), (padding, padding), (padding, padding), (0, 0)))
    cols = []
    for i in range(k):
        for j in range(k):
            cols.append(xp[:, i:i + stride * Ho:stride,
                           j:j + stride * Wo:stride, :])
    pat = jnp.stack(cols, axis=3)                       # (N, Ho, Wo, k*k, C)
    pat = pat.reshape(N * Ho * Wo, k * k * C)
    return pat, Ho, Wo


def bn_fold(bn_params, eps=1e-5):
    """Fold eval-mode BatchNorm2d into per-channel (scale, bias), shape (C,)."""
    gamma, beta, mean, var = bn_params
    scale = gamma / jnp.sqrt(var + eps)
    bias = beta - mean * scale
    return scale, bias


def basic_block_forward(x, params, *, kernel_size, stride, padding,
                        compute_dtype=jnp.bfloat16):
    """Pallas implementation of BasicBlock.forward (eval-mode BN)."""
    N, Cin, H, W = x.shape
    Cout = params["w1"].shape[0]
    k = kernel_size

    # NCHW -> NHWC once at the boundary; everything inside stays channels-last.
    x_nhwc = jnp.transpose(x, (0, 2, 3, 1))

    # ---- conv1 + bn1 + relu (intermediate kept in compute_dtype) -------------
    p1, Ho, Wo = im2col_nhwc(x_nhwc, k, stride, padding)
    w1 = params["w1"].transpose(2, 3, 1, 0).reshape(k * k * Cin, Cout)
    s1, b1 = bn_fold(params["bn1"])
    out1_p = fused_conv_bn_matmul(p1, w1, s1, b1, relu=True,
                                  compute_dtype=compute_dtype,
                                  out_dtype=compute_dtype)
    M = N * Ho * Wo

    # conv2 must preserve spatial dims for the residual add (k == 2*pad + 1).
    Ho2 = Ho + 2 * padding - k + 1
    Wo2 = Wo + 2 * padding - k + 1
    assert (Ho2, Wo2) == (Ho, Wo), "conv2 must preserve H, W for residual add"

    # ---- conv2 + bn2 + residual (fused) + relu --------------------------------
    out1 = out1_p[:M, :Cout].reshape(N, Ho, Wo, Cout)
    p2, _, _ = im2col_nhwc(out1, k, 1, padding)
    w2 = params["w2"].transpose(2, 3, 1, 0).reshape(k * k * Cout, Cout)
    s2, b2 = bn_fold(params["bn2"])

    if stride > 1:
        # downsample = 1x1 conv stride s (no padding) + bn, fused into conv2's
        # epilogue: its "patches" are just the strided spatial slice of x.
        xd = x_nhwc[:, ::stride, ::stride, :].reshape(M, Cin)
        wd = params["wd"].transpose(2, 3, 1, 0).reshape(Cin, Cout)
        sd, bd = bn_fold(params["bnd"])
        wd_folded = wd * sd[None, :]        # fold BN scale into the 1x1 weights
        out_p = fused_conv_bn_matmul(p2, w2, s2, b2, relu=True,
                                     compute_dtype=compute_dtype,
                                     out_dtype=jnp.float32,
                                     ds_patches=xd, ds_w=wd_folded, ds_bias=bd)
    else:
        assert Cin == Cout, "identity residual requires in_planes == out_planes"
        assert (Ho, Wo) == (H, W), "identity residual requires conv1 to preserve H, W"
        res = x_nhwc.reshape(M, Cin)
        out_p = fused_conv_bn_matmul(p2, w2, s2, b2, relu=True,
                                     compute_dtype=compute_dtype,
                                     out_dtype=jnp.float32,
                                     residual=res)

    out = out_p[:M, :Cout].reshape(N, Ho, Wo, Cout)
    return jnp.transpose(out, (0, 3, 1, 2))              # back to NCHW


# -----------------------------------------------------------------------------
# Pure-JAX reference (lax conv) for correctness checking
# -----------------------------------------------------------------------------
def ref_forward(x, params, *, kernel_size, stride, padding):
    def conv(x, w, s, p):
        return jax.lax.conv_general_dilated(
            x, w, (s, s), [(p, p), (p, p)],
            dimension_numbers=("NCHW", "OIHW", "NCHW"))

    def bn(x, bn_params, eps=1e-5):
        gamma, beta, mean, var = bn_params
        inv = gamma / jnp.sqrt(var + eps)
        return (x - mean[None, :, None, None]) * inv[None, :, None, None] \
            + beta[None, :, None, None]

    out = jax.nn.relu(bn(conv(x, params["w1"], stride, padding), params["bn1"]))
    out = bn(conv(out, params["w2"], 1, padding), params["bn2"])
    if stride > 1:
        residual = bn(conv(x, params["wd"], stride, 0), params["bnd"])
    else:
        residual = x
    return jax.nn.relu(out + residual)


def make_params(key, in_planes, out_planes, kernel_size, stride):
    ks = list(jax.random.split(key, 16))

    def rnd(k, shape, scale=0.1):
        return scale * jax.random.normal(k, shape, dtype=jnp.float32)

    def bn_init(k, c):
        k1, k2, k3, k4 = jax.random.split(k, 4)
        gamma = 1.0 + rnd(k1, (c,))
        beta = rnd(k2, (c,))
        mean = rnd(k3, (c,))
        var = jnp.abs(rnd(k4, (c,))) + 0.5
        return (gamma, beta, mean, var)

    params = {
        "w1": rnd(ks[0], (out_planes, in_planes, kernel_size, kernel_size)),
        "bn1": bn_init(ks[1], out_planes),
        "w2": rnd(ks[2], (out_planes, out_planes, kernel_size, kernel_size)),
        "bn2": bn_init(ks[3], out_planes),
    }
    if stride > 1:
        params["wd"] = rnd(ks[4], (out_planes, in_planes, 1, 1))
        params["bnd"] = bn_init(ks[5], out_planes)
    return params


if __name__ == "__main__":
    # Small deterministic config: in=4, out=8, k=3, stride=2, padding=1
    # (stride>1 exercises the fused-downsample branch, like LinkNet encoders).
    N, Cin, H, W = 2, 4, 16, 16
    Cout, K, STRIDE, PAD = 8, 3, 2, 1

    key = jax.random.PRNGKey(0)
    kx, kp, kx1, kp1 = jax.random.split(key, 4)
    x = jax.random.normal(kx, (N, Cin, H, W), dtype=jnp.float32)
    params = make_params(kp, Cin, Cout, K, STRIDE)

    # ---- strict correctness check with f32 MXU inputs ------------------------
    fwd_f32 = jax.jit(functools.partial(
        basic_block_forward, kernel_size=K, stride=STRIDE, padding=PAD,
        compute_dtype=jnp.float32))
    out = jax.block_until_ready(fwd_f32(x, params))
    ref = jax.block_until_ready(
        ref_forward(x, params, kernel_size=K, stride=STRIDE, padding=PAD))
    assert out.shape == (N, Cout, H // STRIDE, W // STRIDE), out.shape
    assert jnp.allclose(out, ref, atol=1e-4, rtol=1e-4), \
        float(jnp.max(jnp.abs(out - ref)))

    # ---- bf16 MXU-input path (f32 accumulation/epilogue), loose sanity check -
    fwd_bf16 = jax.jit(functools.partial(
        basic_block_forward, kernel_size=K, stride=STRIDE, padding=PAD,
        compute_dtype=jnp.bfloat16))
    out_bf16 = jax.block_until_ready(fwd_bf16(x, params))
    assert jnp.allclose(out_bf16, ref, atol=1e-1, rtol=1e-1), \
        float(jnp.max(jnp.abs(out_bf16 - ref)))

    # ---- stride=1 identity-residual branch (Cin == Cout) ---------------------
    x1 = jax.random.normal(kx1, (N, Cout, H, W), dtype=jnp.float32)
    params_s1 = make_params(kp1, Cout, Cout, K, 1)
    fwd_s1 = jax.jit(functools.partial(
        basic_block_forward, kernel_size=K, stride=1, padding=PAD,
        compute_dtype=jnp.float32))
    out_s1 = jax.block_until_ready(fwd_s1(x1, params_s1))
    ref_s1 = jax.block_until_ready(
        ref_forward(x1, params_s1, kernel_size=K, stride=1, padding=PAD))
    assert jnp.allclose(out_s1, ref_s1, atol=1e-4, rtol=1e-4), \
        float(jnp.max(jnp.abs(out_s1 - ref_s1)))

    print("KERNEL_OK")
</pallas_src>

<mosaic_0001>
module attributes {stable_mosaic.version = 11 : i64} {
  func.func @_fused_matmul_kernel(%arg0: i32, %arg1: i32, %arg2: i32, %arg3: memref<128x128xf32, #tpu.memory_space<vmem>>, %arg4: memref<128x128xf32, #tpu.memory_space<vmem>>, %arg5: memref<1x128xf32, #tpu.memory_space<vmem>>, %arg6: memref<1x128xf32, #tpu.memory_space<vmem>>, %arg7: memref<128x128xf32, #tpu.memory_space<vmem>>, %arg8: memref<128x128xf32, #tpu.memory_space<vmem>>) attributes {dimension_semantics = [#tpu.dimension_semantics<parallel>, #tpu.dimension_semantics<parallel>, #tpu.dimension_semantics<arbitrary>], iteration_bounds = array<i64: 1, 1, 1>, scalar_prefetch = 0 : i64, scratch_operands = 1 : i64, tpu.core_type = #tpu.core_type<tc>, window_params = [{transform_indices = @transform_0, window_bounds = array<i64: 128, 128>}, {transform_indices = @transform_1, window_bounds = array<i64: 128, 128>}, {transform_indices = @transform_2, window_bounds = array<i64: 1, 128>}, {transform_indices = @transform_3, window_bounds = array<i64: 1, 128>}, {transform_indices = @transform_4, window_bounds = array<i64: 128, 128>}]} {
    %c0_i32 = arith.constant 0 : i32
    %0 = arith.cmpi eq, %arg2, %c0_i32 : i32
    %1 = arith.extui %0 : i1 to i32
    %c0_i32_0 = arith.constant 0 : i32
    %2 = arith.cmpi ne, %1, %c0_i32_0 : i32
    scf.if %2 {
      %cst_10 = arith.constant 0.000000e+00 : f32
      %12 = vector.broadcast %cst_10 : f32 to vector<128x128xf32>
      %c0_11 = arith.constant 0 : index
      %c0_12 = arith.constant 0 : index
      %13 = vector.load %arg8[%c0_11, %c0_12] : memref<128x128xf32, #tpu.memory_space<vmem>>, vector<128x128xf32>
      tpu.vector_store %arg8[%c0_11, %c0_12], %12 {strides = array<i32>} : memref<128x128xf32, #tpu.memory_space<vmem>>, vector<128x128xf32>,
    } else {
    }
    %c0 = arith.constant 0 : index
    %c0_1 = arith.constant 0 : index
    %3 = vector.load %arg8[%c0, %c0_1] : memref<128x128xf32, #tpu.memory_space<vmem>>, vector<128x128xf32>
    %c0_2 = arith.constant 0 : index
    %c0_3 = arith.constant 0 : index
    %4 = vector.load %arg3[%c0_2, %c0_3] : memref<128x128xf32, #tpu.memory_space<vmem>>, vector<128x128xf32>
    %c0_4 = arith.constant 0 : index
    %c0_5 = arith.constant 0 : index
    %5 = vector.load %arg4[%c0_4, %c0_5] : memref<128x128xf32, #tpu.memory_space<vmem>>, vector<128x128xf32>
    %cst = arith.constant dense<0.000000e+00> : vector<128x128xf32>
    %6 = tpu.matmul %4, %5, %cst {dimension_numbers = #tpu.dot_dimension_numbers<[1], [0], [0], [1], [0, 0, 1, 1], [], []>} : vector<128x128xf32>, vector<128x128xf32>, vector<128x128xf32> -> vector<128x128xf32>
    %7 = arith.addf %3, %6 : vector<128x128xf32>
    %c0_6 = arith.constant 0 : index
    %c0_7 = arith.constant 0 : index
    %8 = vector.load %arg8[%c0_6, %c0_7] : memref<128x128xf32, #tpu.memory_space<vmem>>, vector<128x128xf32>
    tpu.vector_store %arg8[%c0_6, %c0_7], %7 {strides = array<i32>} : memref<128x128xf32, #tpu.memory_space<vmem>>, vector<128x128xf32>,
    %c0_i32_8 = arith.constant 0 : i32
    %9 = arith.cmpi eq, %arg2, %c0_i32_8 : i32
    %10 = arith.extui %9 : i1 to i32
    %c0_i32_9 = arith.constant 0 : i32
    %11 = arith.cmpi ne, %10, %c0_i32_9 : i32
    scf.if %11 {
      %c0_10 = arith.constant 0 : index
      %c0_11 = arith.constant 0 : index
      %12 = vector.load %arg8[%c0_10, %c0_11] : memref<128x128xf32, #tpu.memory_space<vmem>>, vector<128x128xf32>
      %c0_12 = arith.constant 0 : index
      %c0_13 = arith.constant 0 : index
      %13 = vector.load %arg5[%c0_12, %c0_13] : memref<1x128xf32, #tpu.memory_space<vmem>>, vector<1x128xf32>
      %14 = vector.broadcast %13 : vector<1x128xf32> to vector<128x128xf32>
      %15 = arith.mulf %12, %14 : vector<128x128xf32>
      %c0_14 = arith.constant 0 : index
      %c0_15 = arith.constant 0 : index
      %16 = vector.load %arg6[%c0_14, %c0_15] : memref<1x128xf32, #tpu.memory_space<vmem>>, vector<1x128xf32>
      %17 = vector.broadcast %16 : vector<1x128xf32> to vector<128x128xf32>
      %18 = arith.addf %15, %17 : vector<128x128xf32>
      %cst_16 = arith.constant 0.000000e+00 : f32
      %19 = vector.broadcast %cst_16 : f32 to vector<128x128xf32>
      %20 = arith.maximumf %18, %19 : vector<128x128xf32>
      %c0_17 = arith.constant 0 : index
      %c0_18 = arith.constant 0 : index
      %21 = vector.load %arg7[%c0_17, %c0_18] : memref<128x128xf32, #tpu.memory_space<vmem>>, vector<128x128xf32>
      tpu.vector_store %arg7[%c0_17, %c0_18], %20 {strides = array<i32>} : memref<128x128xf32, #tpu.memory_space<vmem>>, vector<128x128xf32>,
    } else {
    }
    return
  }
  func.func @transform_0(%arg0: i32, %arg1: i32, %arg2: i32) -> (i32, i32) {
    %c0_i32 = arith.constant 0 : i32
    return %arg0, %arg2 : i32, i32
  }
  func.func @transform_1(%arg0: i32, %arg1: i32, %arg2: i32) -> (i32, i32) {
    %c0_i32 = arith.constant 0 : i32
    return %arg2, %arg1 : i32, i32
  }
  func.func @transform_2(%arg0: i32, %arg1: i32, %arg2: i32) -> (i32, i32) {
    %c0_i32 = arith.constant 0 : i32
    %c0_i32_0 = arith.constant 0 : i32
    return %c0_i32, %arg1 : i32, i32
  }
  func.func @transform_3(%arg0: i32, %arg1: i32, %arg2: i32) -> (i32, i32) {
    %c0_i32 = arith.constant 0 : i32
    %c0_i32_0 = arith.constant 0 : i32
    return %c0_i32, %arg1 : i32, i32
  }
  func.func @transform_4(%arg0: i32, %arg1: i32, %arg2: i32) -> (i32, i32) {
    %c0_i32 = arith.constant 0 : i32
    return %arg0, %arg1 : i32, i32
  }
}

module attributes {stable_mosaic.version = 11 : i64} {
  func.func @_fused_matmul_kernel(%arg0: i32, %arg1: i32, %arg2: i32, %arg3: memref<128x128xf32, #tpu.memory_space<vmem>>, %arg4: memref<128x128xf32, #tpu.memory_space<vmem>>, %arg5: memref<1x128xf32, #tpu.memory_space<vmem>>, %arg6: memref<1x128xf32, #tpu.memory_space<vmem>>, %arg7: memref<128x128xf32, #tpu.memory_space<vmem>>, %arg8: memref<128x128xf32, #tpu.memory_space<vmem>>, %arg9: memref<1x128xf32, #tpu.memory_space<vmem>>, %arg10: memref<128x128xf32, #tpu.memory_space<vmem>>, %arg11: memref<128x128xf32, #tpu.memory_space<vmem>>) attributes {dimension_semantics = [#tpu.dimension_semantics<parallel>, #tpu.dimension_semantics<parallel>, #tpu.dimension_semantics<arbitrary>], iteration_bounds = array<i64: 1, 1, 1>, scalar_prefetch = 0 : i64, scratch_operands = 1 : i64, tpu.core_type = #tpu.core_type<tc>, window_params = [{transform_indices = @transform_0, window_bounds = array<i64: 128, 128>}, {transform_indices = @transform_1, window_bounds = array<i64: 128, 128>}, {transform_indices = @transform_2, window_bounds = array<i64: 1, 128>}, {transform_indices = @transform_3, window_bounds = array<i64: 1, 128>}, {transform_indices = @transform_4, window_bounds = array<i64: 128, 128>}, {transform_indices = @transform_5, window_bounds = array<i64: 128, 128>}, {transform_indices = @transform_6, window_bounds = array<i64: 1, 128>}, {transform_indices = @transform_7, window_bounds = array<i64: 128, 128>}]} {
    %c0_i32 = arith.constant 0 : i32
    %0 = arith.cmpi eq, %arg2, %c0_i32 : i32
    %1 = arith.extui %0 : i1 to i32
    %c0_i32_0 = arith.constant 0 : i32
    %2 = arith.cmpi ne, %1, %c0_i32_0 : i32
    scf.if %2 {
      %cst_10 = arith.constant 0.000000e+00 : f32
      %12 = vector.broadcast %cst_10 : f32 to vector<128x128xf32>
      %c0_11 = arith.constant 0 : index
      %c0_12 = arith.constant 0 : index
      %13 = vector.load %arg11[%c0_11, %c0_12] : memref<128x128xf32, #tpu.memory_space<vmem>>, vector<128x128xf32>
      tpu.vector_store %arg11[%c0_11, %c0_12], %12 {strides = array<i32>} : memref<128x128xf32, #tpu.memory_space<vmem>>, vector<128x128xf32>,
    } else {
    }
    %c0 = arith.constant 0 : index
    %c0_1 = arith.constant 0 : index
    %3 = vector.load %arg11[%c0, %c0_1] : memref<128x128xf32, #tpu.memory_space<vmem>>, vector<128x128xf32>
    %c0_2 = arith.constant 0 : index
    %c0_3 = arith.constant 0 : index
    %4 = vector.load %arg3[%c0_2, %c0_3] : memref<128x128xf32, #tpu.memory_space<vmem>>, vector<128x128xf32>
    %c0_4 = arith.constant 0 : index
    %c0_5 = arith.constant 0 : index
    %5 = vector.load %arg4[%c0_4, %c0_5] : memref<128x128xf32, #tpu.memory_space<vmem>>, vector<128x128xf32>
    %cst = arith.constant dense<0.000000e+00> : vector<128x128xf32>
    %6 = tpu.matmul %4, %5, %cst {dimension_numbers = #tpu.dot_dimension_numbers<[1], [0], [0], [1], [0, 0, 1, 1], [], []>} : vector<128x128xf32>, vector<128x128xf32>, vector<128x128xf32> -> vector<128x128xf32>
    %7 = arith.addf %3, %6 : vector<128x128xf32>
    %c0_6 = arith.constant 0 : index
    %c0_7 = arith.constant 0 : index
    %8 = vector.load %arg11[%c0_6, %c0_7] : memref<128x128xf32, #tpu.memory_space<vmem>>, vector<128x128xf32>
    tpu.vector_store %arg11[%c0_6, %c0_7], %7 {strides = array<i32>} : memref<128x128xf32, #tpu.memory_space<vmem>>, vector<128x128xf32>,
    %c0_i32_8 = arith.constant 0 : i32
    %9 = arith.cmpi eq, %arg2, %c0_i32_8 : i32
    %10 = arith.extui %9 : i1 to i32
    %c0_i32_9 = arith.constant 0 : i32
    %11 = arith.cmpi ne, %10, %c0_i32_9 : i32
    scf.if %11 {
      %c0_10 = arith.constant 0 : index
      %c0_11 = arith.constant 0 : index
      %12 = vector.load %arg11[%c0_10, %c0_11] : memref<128x128xf32, #tpu.memory_space<vmem>>, vector<128x128xf32>
      %c0_12 = arith.constant 0 : index
      %c0_13 = arith.constant 0 : index
      %13 = vector.load %arg5[%c0_12, %c0_13] : memref<1x128xf32, #tpu.memory_space<vmem>>, vector<1x128xf32>
      %14 = vector.broadcast %13 : vector<1x128xf32> to vector<128x128xf32>
      %15 = arith.mulf %12, %14 : vector<128x128xf32>
      %c0_14 = arith.constant 0 : index
      %c0_15 = arith.constant 0 : index
      %16 = vector.load %arg6[%c0_14, %c0_15] : memref<1x128xf32, #tpu.memory_space<vmem>>, vector<1x128xf32>
      %17 = vector.broadcast %16 : vector<1x128xf32> to vector<128x128xf32>
      %18 = arith.addf %15, %17 : vector<128x128xf32>
      %c0_16 = arith.constant 0 : index
      %c0_17 = arith.constant 0 : index
      %19 = vector.load %arg7[%c0_16, %c0_17] : memref<128x128xf32, #tpu.memory_space<vmem>>, vector<128x128xf32>
      %c0_18 = arith.constant 0 : index
      %c0_19 = arith.constant 0 : index
      %20 = vector.load %arg8[%c0_18, %c0_19] : memref<128x128xf32, #tpu.memory_space<vmem>>, vector<128x128xf32>
      %cst_20 = arith.constant dense<0.000000e+00> : vector<128x128xf32>
      %21 = tpu.matmul %19, %20, %cst_20 {dimension_numbers = #tpu.dot_dimension_numbers<[1], [0], [0], [1], [0, 0, 1, 1], [], []>} : vector<128x128xf32>, vector<128x128xf32>, vector<128x128xf32> -> vector<128x128xf32>
      %22 = arith.addf %18, %21 : vector<128x128xf32>
      %c0_21 = arith.constant 0 : index
      %c0_22 = arith.constant 0 : index
      %23 = vector.load %arg9[%c0_21, %c0_22] : memref<1x128xf32, #tpu.memory_space<vmem>>, vector<1x128xf32>
      %24 = vector.broadcast %23 : vector<1x128xf32> to vector<128x128xf32>
      %25 = arith.addf %22, %24 : vector<128x128xf32>
      %cst_23 = arith.constant 0.000000e+00 : f32
      %26 = vector.broadcast %cst_23 : f32 to vector<128x128xf32>
      %27 = arith.maximumf %25, %26 : vector<128x128xf32>
      %c0_24 = arith.constant 0 : index
      %c0_25 = arith.constant 0 : index
      %28 = vector.load %arg10[%c0_24, %c0_25] : memref<128x128xf32, #tpu.memory_space<vmem>>, vector<128x128xf32>
      tpu.vector_store %arg10[%c0_24, %c0_25], %27 {strides = array<i32>} : memref<128x128xf32, #tpu.memory_space<vmem>>, vector<128x128xf32>,
    } else {
    }
    return
  }
  func.func @transform_0(%arg0: i32, %arg1: i32, %arg2: i32) -> (i32, i32) {
    %c0_i32 = arith.constant 0 : i32
    return %arg0, %arg2 : i32, i32
  }
  func.func @transform_1(%arg0: i32, %arg1: i32, %arg2: i32) -> (i32, i32) {
    %c0_i32 = arith.constant 0 : i32
    return %arg2, %arg1 : i32, i32
  }
  func.func @transform_2(%arg0: i32, %arg1: i32, %arg2: i32) -> (i32, i32) {
    %c0_i32 = arith.constant 0 : i32
    %c0_i32_0 = arith.constant 0 : i32
    return %c0_i32, %arg1 : i32, i32
  }
  func.func @transform_3(%arg0: i32, %arg1: i32, %arg2: i32) -> (i32, i32) {
    %c0_i32 = arith.constant 0 : i32
    %c0_i32_0 = arith.constant 0 : i32
    return %c0_i32, %arg1 : i32, i32
  }
  func.func @transform_4(%arg0: i32, %arg1: i32, %arg2: i32) -> (i32, i32) {
    %c0_i32 = arith.constant 0 : i32
    %c0_i32_0 = arith.constant 0 : i32
    return %arg0, %c0_i32 : i32, i32
  }
  func.func @transform_5(%arg0: i32, %arg1: i32, %arg2: i32) -> (i32, i32) {
    %c0_i32 = arith.constant 0 : i32
    %c0_i32_0 = arith.constant 0 : i32
    return %c0_i32, %arg1 : i32, i32
  }
  func.func @transform_6(%arg0: i32, %arg1: i32, %arg2: i32) -> (i32, i32) {
    %c0_i32 = arith.constant 0 : i32
    %c0_i32_0 = arith.constant 0 : i32
    return %c0_i32, %arg1 : i32, i32
  }
  func.func @transform_7(%arg0: i32, %arg1: i32, %arg2: i32) -> (i32, i32) {
    %c0_i32 = arith.constant 0 : i32
    return %arg0, %arg1 : i32, i32
  }
}

</mosaic_0001>

<llo_original>
// kernel: basic_block_forward.2
$region0: #{basic_block_forward.2}
  #allocation0 [shape = 'u32[]', space=smem, size = 0x4, offset = 0x4, fixed_abs, tag = 'smem constant byte address 0x4 - core index']
  #allocation1 [shape = 'u32[72,128]{1,0:T(1,128)}', space=vmem, size = 0x9000, scoped, tag = 'internal scratch']
  #allocation2 [shape = 'f32[128,128]{1,0:T(8,128)}', space=vmem, size = 0x10000, scoped, tag = 'scratch operand']
  %s0 = inlined_call_operand.vmem [shape: f32[128,128], index: 0, kind: input, shape index: {}]
  %s1 = inlined_call_operand.vmem [shape: f32[128,128], index: 1, kind: input, shape index: {}]
  %s2 = inlined_call_operand.vmem [shape: f32[1,128], index: 2, kind: input, shape index: {}]
  %s3 = inlined_call_operand.vmem [shape: f32[1,128], index: 3, kind: input, shape index: {}]
  %s4 = inlined_call_operand.vmem [shape: f32[128,128], index: 4, kind: output, shape index: {}]
  %s5 = sld [smem:[#allocation0]]
  $region34: #{basic_block_forward.2} parent=0
    _
  %s7 = ssub.s32 1, %s5
  %s8 = scalar_select 0, %s7, %s5
  // Predicated region
  $region2: #{basic_block_forward.2} parent=0 // pred_check
    _
  $region3: #{basic_block_forward.2} parent=0 // pred_check_branch
    %10 = sbr.rel (0) target = $region5
  $region4: #{basic_block_forward.2} parent=0 // pred_region
    _
  $region5: #{basic_block_forward.2} parent=0 // pred_fallthru
    _
  // Predicated region
  $region6: #{basic_block_forward.2} parent=0 // pred_check
    _
  $region7: #{basic_block_forward.2} parent=0 // pred_check_branch
    %12 = sbr.rel (0) target = $region9
  $region8: #{basic_block_forward.2} parent=0 // pred_region
    _
  $region9: #{basic_block_forward.2} parent=0 // pred_fallthru
    _
  // Predicated region
  $region10: #{basic_block_forward.2} parent=0 // pred_check
    _
  $region11: #{basic_block_forward.2} parent=0 // pred_check_branch
    %14 = sbr.rel (0) target = $region13
  $region12: #{basic_block_forward.2} parent=0 // pred_region
    _
  $region13: #{basic_block_forward.2} parent=0 // pred_fallthru
    _
  // Predicated region
  $region14: #{basic_block_forward.2} parent=0 // pred_check
    _
  $region15: #{basic_block_forward.2} parent=0 // pred_check_branch
    %16 = sbr.rel (0) target = $region17
  $region16: #{basic_block_forward.2} parent=0 // pred_region
    _
  $region17: #{basic_block_forward.2} parent=0 // pred_fallthru
    _
  %p17 = scmp.eq.s32.totalorder 0, 0
  // Predicated region
  $region18: #{basic_block_forward.2} parent=0 // pred_check
    %p18 = pneg %p17
  $region19: #{basic_block_forward.2} parent=0 // pred_check_branch
    %20 = sbr.rel (%p18) target = $region21
  $region20: #{basic_block_forward.2} parent=0 // pred_region
    %21 = vst [vmem:[#allocation2] sm:$0xff] 0.0
    %22 = vst [vmem:[#allocation2 + $0x8] sm:$0xff] 0.0
    %23 = vst [vmem:[#allocation2 + $0x10] sm:$0xff] 0.0
    %24 = vst [vmem:[#allocation2 + $0x18] sm:$0xff] 0.0
    %25 = vst [vmem:[#allocation2 + $0x20] sm:$0xff] 0.0
    %26 = vst [vmem:[#allocation2 + $0x28] sm:$0xff] 0.0
    %27 = vst [vmem:[#allocation2 + $0x30] sm:$0xff] 0.0
    %28 = vst [vmem:[#allocation2 + $0x38] sm:$0xff] 0.0
    %29 = vst [vmem:[#allocation2 + $0x40] sm:$0xff] 0.0
    %30 = vst [vmem:[#allocation2 + $0x48] sm:$0xff] 0.0
    %31 = vst [vmem:[#allocation2 + $0x50] sm:$0xff] 0.0
    %32 = vst [vmem:[#allocation2 + $0x58] sm:$0xff] 0.0
    %33 = vst [vmem:[#allocation2 + $0x60] sm:$0xff] 0.0
    %34 = vst [vmem:[#allocation2 + $0x68] sm:$0xff] 0.0
    %35 = vst [vmem:[#allocation2 + $0x70] sm:$0xff] 0.0
    %36 = vst [vmem:[#allocation2 + $0x78] sm:$0xff] 0.0
  $region21: #{basic_block_forward.2} parent=0 // pred_fallthru
    _
  %v37 = vld [vmem:[#allocation2] sm:$0xff]
  %v38 = vld [vmem:[#allocation2 + $0x8] sm:$0xff]
  %v39 = vld [vmem:[#allocation2 + $0x10] sm:$0xff]
  %v40 = vld [vmem:[#allocation2 + $0x18] sm:$0xff]
  %v41 = vld [vmem:[#allocation2 + $0x20] sm:$0xff]
  %v42 = vld [vmem:[#allocation2 + $0x28] sm:$0xff]
  %v43 = vld [vmem:[#allocation2 + $0x30] sm:$0xff]
  %v44 = vld [vmem:[#allocation2 + $0x38] sm:$0xff]
  %v45 = vld [vmem:[#allocation2 + $0x40] sm:$0xff]
  %v46 = vld [vmem:[#allocation2 + $0x48] sm:$0xff]
  %v47 = vld [vmem:[#allocation2 + $0x50] sm:$0xff]
  %v48 = vld [vmem:[#allocation2 + $0x58] sm:$0xff]
  %v49 = vld [vmem:[#allocation2 + $0x60] sm:$0xff]
  %v50 = vld [vmem:[#allocation2 + $0x68] sm:$0xff]
  %v51 = vld [vmem:[#allocation2 + $0x70] sm:$0xff]
  %v52 = vld [vmem:[#allocation2 + $0x78] sm:$0xff]
  %v53 = vld [vmem:[%s0] sm:$0xff]
  %v54 = vld [vmem:[%s0 + $0x8] sm:$0xff]
  %v55 = vld [vmem:[%s0 + $0x10] sm:$0xff]
  %v56 = vld [vmem:[%s0 + $0x18] sm:$0xff]
  %v57 = vld [vmem:[%s0 + $0x20] sm:$0xff]
  %v58 = vld [vmem:[%s0 + $0x28] sm:$0xff]
  %v59 = vld [vmem:[%s0 + $0x30] sm:$0xff]
  %v60 = vld [vmem:[%s0 + $0x38] sm:$0xff]
  %v61 = vld [vmem:[%s0 + $0x40] sm:$0xff]
  %v62 = vld [vmem:[%s0 + $0x48] sm:$0xff]
  %v63 = vld [vmem:[%s0 + $0x50] sm:$0xff]
  %v64 = vld [vmem:[%s0 + $0x58] sm:$0xff]
  %v65 = vld [vmem:[%s0 + $0x60] sm:$0xff]
  %v66 = vld [vmem:[%s0 + $0x68] sm:$0xff]
  %v67 = vld [vmem:[%s0 + $0x70] sm:$0xff]
  %v68 = vld [vmem:[%s0 + $0x78] sm:$0xff]
  %v69 = vld [vmem:[%s1] sm:$0xff]
  %v70 = vld [vmem:[%s1 + $0x8] sm:$0xff]
  %v71 = vld [vmem:[%s1 + $0x10] sm:$0xff]
  %v72 = vld [vmem:[%s1 + $0x18] sm:$0xff]
  %v73 = vld [vmem:[%s1 + $0x20] sm:$0xff]
  %v74 = vld [vmem:[%s1 + $0x28] sm:$0xff]
  %v75 = vld [vmem:[%s1 + $0x30] sm:$0xff]
  %v76 = vld [vmem:[%s1 + $0x38] sm:$0xff]
  %v77 = vld [vmem:[%s1 + $0x40] sm:$0xff]
  %v78 = vld [vmem:[%s1 + $0x48] sm:$0xff]
  %v79 = vld [vmem:[%s1 + $0x50] sm:$0xff]
  %v80 = vld [vmem:[%s1 + $0x58] sm:$0xff]
  %v81 = vld [vmem:[%s1 + $0x60] sm:$0xff]
  %v82 = vld [vmem:[%s1 + $0x68] sm:$0xff]
  %v83 = vld [vmem:[%s1 + $0x70] sm:$0xff]
  %v84 = vld [vmem:[%s1 + $0x78] sm:$0xff]
  %85 = vmatpush.msra.mxu0 %v84
  %86 = vmatpush.msra.mxu0 %v83
  %87 = vmatpush.msra.mxu0 %v82
  %88 = vmatpush.msra.mxu0 %v81
  %89 = vmatpush.msra.mxu0 %v80
  %90 = vmatpush.msra.mxu0 %v79
  %91 = vmatpush.msra.mxu0 %v78
  %92 = vmatpush.msra.mxu0 %v77
  %93 = vmatpush.msra.mxu0 %v76
  %94 = vmatpush.msra.mxu0 %v75
  %95 = vmatpush.msra.mxu0 %v74
  %96 = vmatpush.msra.mxu0 %v73
  %97 = vmatpush.msra.mxu0 %v72
  %98 = vmatpush.msra.mxu0 %v71
  %99 = vmatpush.msra.mxu0 %v70
  %100 = vmatpush.msra.mxu0 %v69
  %101 = vmatmul.f32.gmra.mxu0 %v53
  %v102 = vpop.f32.mrf.mxu0
  %v103 = vadd.f32 0.0, %v102
  %104 = vmatmul.f32.gmra.mxu0 %v54
  %v105 = vpop.f32.mrf.mxu0
  %v106 = vadd.f32 0.0, %v105
  %107 = vmatmul.f32.gmra.mxu0 %v55
  %v108 = vpop.f32.mrf.mxu0
  %v109 = vadd.f32 0.0, %v108
  %110 = vmatmul.f32.gmra.mxu0 %v56
  %v111 = vpop.f32.mrf.mxu0
  %v112 = vadd.f32 0.0, %v111
  %113 = vmatmul.f32.gmra.mxu0 %v57
  %v114 = vpop.f32.mrf.mxu0
  %v115 = vadd.f32 0.0, %v114
  %116 = vmatmul.f32.gmra.mxu0 %v58
  %v117 = vpop.f32.mrf.mxu0
  %v118 = vadd.f32 0.0, %v117
  %119 = vmatmul.f32.gmra.mxu0 %v59
  %v120 = vpop.f32.mrf.mxu0
  %v121 = vadd.f32 0.0, %v120
  %122 = vmatmul.f32.gmra.mxu0 %v60
  %v123 = vpop.f32.mrf.mxu0
  %v124 = vadd.f32 0.0, %v123
  %125 = vmatmul.f32.gmra.mxu0 %v61
  %v126 = vpop.f32.mrf.mxu0
  %v127 = vadd.f32 0.0, %v126
  %128 = vmatmul.f32.gmra.mxu0 %v62
  %v129 = vpop.f32.mrf.mxu0
  %v130 = vadd.f32 0.0, %v129
  %131 = vmatmul.f32.gmra.mxu0 %v63
  %v132 = vpop.f32.mrf.mxu0
  %v133 = vadd.f32 0.0, %v132
  %134 = vmatmul.f32.gmra.mxu0 %v64
  %v135 = vpop.f32.mrf.mxu0
  %v136 = vadd.f32 0.0, %v135
  %137 = vmatmul.f32.gmra.mxu0 %v65
  %v138 = vpop.f32.mrf.mxu0
  %v139 = vadd.f32 0.0, %v138
  %140 = vmatmul.f32.gmra.mxu0 %v66
  %v141 = vpop.f32.mrf.mxu0
  %v142 = vadd.f32 0.0, %v141
  %143 = vmatmul.f32.gmra.mxu0 %v67
  %v144 = vpop.f32.mrf.mxu0
  %v145 = vadd.f32 0.0, %v144
  %146 = vmatmul.f32.gmra.mxu0 %v68
  %v147 = vpop.f32.mrf.mxu0
  %v148 = vadd.f32 0.0, %v147
  %149 = vdwg.mxu0
  %v150 = vadd.f32 %v37, %v103
  %v151 = vadd.f32 %v38, %v106
  %v152 = vadd.f32 %v39, %v109
  %v153 = vadd.f32 %v40, %v112
  %v154 = vadd.f32 %v41, %v115
  %v155 = vadd.f32 %v42, %v118
  %v156 = vadd.f32 %v43, %v121
  %v157 = vadd.f32 %v44, %v124
  %v158 = vadd.f32 %v45, %v127
  %v159 = vadd.f32 %v46, %v130
  %v160 = vadd.f32 %v47, %v133
  %v161 = vadd.f32 %v48, %v136
  %v162 = vadd.f32 %v49, %v139
  %v163 = vadd.f32 %v50, %v142
  %v164 = vadd.f32 %v51, %v145
  %v165 = vadd.f32 %v52, %v148
  %166 = vst [vmem:[#allocation2] sm:$0xff] %v150
  %167 = vst [vmem:[#allocation2 + $0x8] sm:$0xff] %v151
  %168 = vst [vmem:[#allocation2 + $0x10] sm:$0xff] %v152
  %169 = vst [vmem:[#allocation2 + $0x18] sm:$0xff] %v153
  %170 = vst [vmem:[#allocation2 + $0x20] sm:$0xff] %v154
  %171 = vst [vmem:[#allocation2 + $0x28] sm:$0xff] %v155
  %172 = vst [vmem:[#allocation2 + $0x30] sm:$0xff] %v156
  %173 = vst [vmem:[#allocation2 + $0x38] sm:$0xff] %v157
  %174 = vst [vmem:[#allocation2 + $0x40] sm:$0xff] %v158
  %175 = vst [vmem:[#allocation2 + $0x48] sm:$0xff] %v159
  %176 = vst [vmem:[#allocation2 + $0x50] sm:$0xff] %v160
  %177 = vst [vmem:[#allocation2 + $0x58] sm:$0xff] %v161
  %178 = vst [vmem:[#allocation2 + $0x60] sm:$0xff] %v162
  %179 = vst [vmem:[#allocation2 + $0x68] sm:$0xff] %v163
  %180 = vst [vmem:[#allocation2 + $0x70] sm:$0xff] %v164
  %181 = vst [vmem:[#allocation2 + $0x78] sm:$0xff] %v165
  // Predicated region
  $region22: #{basic_block_forward.2} parent=0 // pred_check
    %p182 = pneg %p17
  $region23: #{basic_block_forward.2} parent=0 // pred_check_branch
    %184 = sbr.rel (%p182) target = $region25
  $region24: #{basic_block_forward.2} parent=0 // pred_region
    %v185 = vld [vmem:[#allocation2] sm:$0xff]
    %v186 = vld [vmem:[#allocation2 + $0x8] sm:$0xff]
    %v187 = vld [vmem:[#allocation2 + $0x10] sm:$0xff]
    %v188 = vld [vmem:[#allocation2 + $0x18] sm:$0xff]
    %v189 = vld [vmem:[#allocation2 + $0x20] sm:$0xff]
    %v190 = vld [vmem:[#allocation2 + $0x28] sm:$0xff]
    %v191 = vld [vmem:[#allocation2 + $0x30] sm:$0xff]
    %v192 = vld [vmem:[#allocation2 + $0x38] sm:$0xff]
    %v193 = vld [vmem:[#allocation2 + $0x40] sm:$0xff]
    %v194 = vld [vmem:[#allocation2 + $0x48] sm:$0xff]
    %v195 = vld [vmem:[#allocation2 + $0x50] sm:$0xff]
    %v196 = vld [vmem:[#allocation2 + $0x58] sm:$0xff]
    %v197 = vld [vmem:[#allocation2 + $0x60] sm:$0xff]
    %v198 = vld [vmem:[#allocation2 + $0x68] sm:$0xff]
    %v199 = vld [vmem:[#allocation2 + $0x70] sm:$0xff]
    %v200 = vld [vmem:[#allocation2 + $0x78] sm:$0xff]
    %v201 = vld [vmem:[%s2] sm:$0x1]
    %v203 = vperm.slane %v201, 0
    %v205 = vmul.f32 %v185, %v203
    %v206 = vmul.f32 %v186, %v203
    %v207 = vmul.f32 %v187, %v203
    %v208 = vmul.f32 %v188, %v203
    %v209 = vmul.f32 %v189, %v203
    %v210 = vmul.f32 %v190, %v203
    %v211 = vmul.f32 %v191, %v203
    %v212 = vmul.f32 %v192, %v203
    %v213 = vmul.f32 %v193, %v203
    %v214 = vmul.f32 %v194, %v203
    %v215 = vmul.f32 %v195, %v203
    %v216 = vmul.f32 %v196, %v203
    %v217 = vmul.f32 %v197, %v203
    %v218 = vmul.f32 %v198, %v203
    %v219 = vmul.f32 %v199, %v203
    %v220 = vmul.f32 %v200, %v203
    %v221 = vld [vmem:[%s3] sm:$0x1]
    %v223 = vperm.slane %v221, 0
    %v225 = vadd.f32 %v205, %v223
    %v226 = vadd.f32 %v206, %v223
    %v227 = vadd.f32 %v207, %v223
    %v228 = vadd.f32 %v208, %v223
    %v229 = vadd.f32 %v209, %v223
    %v230 = vadd.f32 %v210, %v223
    %v231 = vadd.f32 %v211, %v223
    %v232 = vadd.f32 %v212, %v223
    %v233 = vadd.f32 %v213, %v223
    %v234 = vadd.f32 %v214, %v223
    %v235 = vadd.f32 %v215, %v223
    %v236 = vadd.f32 %v216, %v223
    %v237 = vadd.f32 %v217, %v223
    %v238 = vadd.f32 %v218, %v223
    %v239 = vadd.f32 %v219, %v223
    %v240 = vadd.f32 %v220, %v223
    %v241 = vmax.f32 %v225, 0.0
    %v242 = vmax.f32 %v226, 0.0
    %v243 = vmax.f32 %v227, 0.0
    %v244 = vmax.f32 %v228, 0.0
    %v245 = vmax.f32 %v229, 0.0
    %v246 = vmax.f32 %v230, 0.0
    %v247 = vmax.f32 %v231, 0.0
    %v248 = vmax.f32 %v232, 0.0
    %v249 = vmax.f32 %v233, 0.0
    %v250 = vmax.f32 %v234, 0.0
    %v251 = vmax.f32 %v235, 0.0
    %v252 = vmax.f32 %v236, 0.0
    %v253 = vmax.f32 %v237, 0.0
    %v254 = vmax.f32 %v238, 0.0
    %v255 = vmax.f32 %v239, 0.0
    %v256 = vmax.f32 %v240, 0.0
    %257 = vst [vmem:[%s4] sm:$0xff] %v241
    %258 = vst [vmem:[%s4 + $0x8] sm:$0xff] %v242
    %259 = vst [vmem:[%s4 + $0x10] sm:$0xff] %v243
    %260 = vst [vmem:[%s4 + $0x18] sm:$0xff] %v244
    %261 = vst [vmem:[%s4 + $0x20] sm:$0xff] %v245
    %262 = vst [vmem:[%s4 + $0x28] sm:$0xff] %v246
    %263 = vst [vmem:[%s4 + $0x30] sm:$0xff] %v247
    %264 = vst [vmem:[%s4 + $0x38] sm:$0xff] %v248
    %265 = vst [vmem:[%s4 + $0x40] sm:$0xff] %v249
    %266 = vst [vmem:[%s4 + $0x48] sm:$0xff] %v250
    %267 = vst [vmem:[%s4 + $0x50] sm:$0xff] %v251
    %268 = vst [vmem:[%s4 + $0x58] sm:$0xff] %v252
    %269 = vst [vmem:[%s4 + $0x60] sm:$0xff] %v253
    %270 = vst [vmem:[%s4 + $0x68] sm:$0xff] %v254
    %271 = vst [vmem:[%s4 + $0x70] sm:$0xff] %v255
    %272 = vst [vmem:[%s4 + $0x78] sm:$0xff] %v256
  $region25: #{basic_block_forward.2} parent=0 // pred_fallthru
    _
  // Predicated region
  $region26: #{basic_block_forward.2} parent=0 // pred_check
    _
  $region27: #{basic_block_forward.2} parent=0 // pred_check_branch
    %274 = sbr.rel (0) target = $region29
  $region28: #{basic_block_forward.2} parent=0 // pred_region
    _
  $region29: #{basic_block_forward.2} parent=0 // pred_fallthru
    _
  // Predicated region
  $region30: #{basic_block_forward.2} parent=0 // pred_check
    _
  $region31: #{basic_block_forward.2} parent=0 // pred_check_branch
    %276 = sbr.rel (0) target = $region33
  $region32: #{basic_block_forward.2} parent=0 // pred_region
    _
  $region33: #{basic_block_forward.2} parent=0 // pred_fallthru
    _

// kernel: basic_block_forward.3
$region0: #{basic_block_forward.3}
  #allocation0 [shape = 'u32[]', space=smem, size = 0x4, offset = 0x4, fixed_abs, tag = 'smem constant byte address 0x4 - core index']
  #allocation1 [shape = 'u32[72,128]{1,0:T(1,128)}', space=vmem, size = 0x9000, scoped, tag = 'internal scratch']
  #allocation2 [shape = 'f32[128,128]{1,0:T(8,128)}', space=vmem, size = 0x10000, scoped, tag = 'scratch operand']
  %s0 = inlined_call_operand.vmem [shape: f32[128,128], index: 0, kind: input, shape index: {}]
  %s1 = inlined_call_operand.vmem [shape: f32[128,128], index: 1, kind: input, shape index: {}]
  %s2 = inlined_call_operand.vmem [shape: f32[1,128], index: 2, kind: input, shape index: {}]
  %s3 = inlined_call_operand.vmem [shape: f32[1,128], index: 3, kind: input, shape index: {}]
  %s4 = inlined_call_operand.vmem [shape: f32[128,128], index: 4, kind: input, shape index: {}]
  %s5 = inlined_call_operand.vmem [shape: f32[128,128], index: 5, kind: input, shape index: {}]
  %s6 = inlined_call_operand.vmem [shape: f32[1,128], index: 6, kind: input, shape index: {}]
  %s7 = inlined_call_operand.vmem [shape: f32[128,128], index: 7, kind: output, shape index: {}]
  %s8 = sld [smem:[#allocation0]]
  $region46: #{basic_block_forward.3} parent=0
    _
  %s10 = ssub.s32 1, %s8
  %s11 = scalar_select 0, %s10, %s8
  // Predicated region
  $region2: #{basic_block_forward.3} parent=0 // pred_check
    _
  $region3: #{basic_block_forward.3} parent=0 // pred_check_branch
    %13 = sbr.rel (0) target = $region5
  $region4: #{basic_block_forward.3} parent=0 // pred_region
    _
  $region5: #{basic_block_forward.3} parent=0 // pred_fallthru
    _
  // Predicated region
  $region6: #{basic_block_forward.3} parent=0 // pred_check
    _
  $region7: #{basic_block_forward.3} parent=0 // pred_check_branch
    %15 = sbr.rel (0) target = $region9
  $region8: #{basic_block_forward.3} parent=0 // pred_region
    _
  $region9: #{basic_block_forward.3} parent=0 // pred_fallthru
    _
  // Predicated region
  $region10: #{basic_block_forward.3} parent=0 // pred_check
    _
  $region11: #{basic_block_forward.3} parent=0 // pred_check_branch
    %17 = sbr.rel (0) target = $region13
  $region12: #{basic_block_forward.3} parent=0 // pred_region
    _
  $region13: #{basic_block_forward.3} parent=0 // pred_fallthru
    _
  // Predicated region
  $region14: #{basic_block_forward.3} parent=0 // pred_check
    _
  $region15: #{basic_block_forward.3} parent=0 // pred_check_branch
    %19 = sbr.rel (0) target = $region17
  $region16: #{basic_block_forward.3} parent=0 // pred_region
    _
  $region17: #{basic_block_forward.3} parent=0 // pred_fallthru
    _
  // Predicated region
  $region18: #{basic_block_forward.3} parent=0 // pred_check
    _
  $region19: #{basic_block_forward.3} parent=0 // pred_check_branch
    %21 = sbr.rel (0) target = $region21
  $region20: #{basic_block_forward.3} parent=0 // pred_region
    _
  $region21: #{basic_block_forward.3} parent=0 // pred_fallthru
    _
  // Predicated region
  $region22: #{basic_block_forward.3} parent=0 // pred_check
    _
  $region23: #{basic_block_forward.3} parent=0 // pred_check_branch
    %23 = sbr.rel (0) target = $region25
  $region24: #{basic_block_forward.3} parent=0 // pred_region
    _
  $region25: #{basic_block_forward.3} parent=0 // pred_fallthru
    _
  // Predicated region
  $region26: #{basic_block_forward.3} parent=0 // pred_check
    _
  $region27: #{basic_block_forward.3} parent=0 // pred_check_branch
    %25 = sbr.rel (0) target = $region29
  $region28: #{basic_block_forward.3} parent=0 // pred_region
    _
  $region29: #{basic_block_forward.3} parent=0 // pred_fallthru
    _
  %p26 = scmp.eq.s32.totalorder 0, 0
  // Predicated region
  $region30: #{basic_block_forward.3} parent=0 // pred_check
    %p27 = pneg %p26
  $region31: #{basic_block_forward.3} parent=0 // pred_check_branch
    %29 = sbr.rel (%p27) target = $region33
  $region32: #{basic_block_forward.3} parent=0 // pred_region
    %30 = vst [vmem:[#allocation2] sm:$0xff] 0.0
    %31 = vst [vmem:[#allocation2 + $0x8] sm:$0xff] 0.0
    %32 = vst [vmem:[#allocation2 + $0x10] sm:$0xff] 0.0
    %33 = vst [vmem:[#allocation2 + $0x18] sm:$0xff] 0.0
    %34 = vst [vmem:[#allocation2 + $0x20] sm:$0xff] 0.0
    %35 = vst [vmem:[#allocation2 + $0x28] sm:$0xff] 0.0
    %36 = vst [vmem:[#allocation2 + $0x30] sm:$0xff] 0.0
    %37 = vst [vmem:[#allocation2 + $0x38] sm:$0xff] 0.0
    %38 = vst [vmem:[#allocation2 + $0x40] sm:$0xff] 0.0
    %39 = vst [vmem:[#allocation2 + $0x48] sm:$0xff] 0.0
    %40 = vst [vmem:[#allocation2 + $0x50] sm:$0xff] 0.0
    %41 = vst [vmem:[#allocation2 + $0x58] sm:$0xff] 0.0
    %42 = vst [vmem:[#allocation2 + $0x60] sm:$0xff] 0.0
    %43 = vst [vmem:[#allocation2 + $0x68] sm:$0xff] 0.0
    %44 = vst [vmem:[#allocation2 + $0x70] sm:$0xff] 0.0
    %45 = vst [vmem:[#allocation2 + $0x78] sm:$0xff] 0.0
  $region33: #{basic_block_forward.3} parent=0 // pred_fallthru
    _
  %v46 = vld [vmem:[#allocation2] sm:$0xff]
  %v47 = vld [vmem:[#allocation2 + $0x8] sm:$0xff]
  %v48 = vld [vmem:[#allocation2 + $0x10] sm:$0xff]
  %v49 = vld [vmem:[#allocation2 + $0x18] sm:$0xff]
  %v50 = vld [vmem:[#allocation2 + $0x20] sm:$0xff]
  %v51 = vld [vmem:[#allocation2 + $0x28] sm:$0xff]
  %v52 = vld [vmem:[#allocation2 + $0x30] sm:$0xff]
  %v53 = vld [vmem:[#allocation2 + $0x38] sm:$0xff]
  %v54 = vld [vmem:[#allocation2 + $0x40] sm:$0xff]
  %v55 = vld [vmem:[#allocation2 + $0x48] sm:$0xff]
  %v56 = vld [vmem:[#allocation2 + $0x50] sm:$0xff]
  %v57 = vld [vmem:[#allocation2 + $0x58] sm:$0xff]
  %v58 = vld [vmem:[#allocation2 + $0x60] sm:$0xff]
  %v59 = vld [vmem:[#allocation2 + $0x68] sm:$0xff]
  %v60 = vld [vmem:[#allocation2 + $0x70] sm:$0xff]
  %v61 = vld [vmem:[#allocation2 + $0x78] sm:$0xff]
  %v62 = vld [vmem:[%s0] sm:$0xff]
  %v63 = vld [vmem:[%s0 + $0x8] sm:$0xff]
  %v64 = vld [vmem:[%s0 + $0x10] sm:$0xff]
  %v65 = vld [vmem:[%s0 + $0x18] sm:$0xff]
  %v66 = vld [vmem:[%s0 + $0x20] sm:$0xff]
  %v67 = vld [vmem:[%s0 + $0x28] sm:$0xff]
  %v68 = vld [vmem:[%s0 + $0x30] sm:$0xff]
  %v69 = vld [vmem:[%s0 + $0x38] sm:$0xff]
  %v70 = vld [vmem:[%s0 + $0x40] sm:$0xff]
  %v71 = vld [vmem:[%s0 + $0x48] sm:$0xff]
  %v72 = vld [vmem:[%s0 + $0x50] sm:$0xff]
  %v73 = vld [vmem:[%s0 + $0x58] sm:$0xff]
  %v74 = vld [vmem:[%s0 + $0x60] sm:$0xff]
  %v75 = vld [vmem:[%s0 + $0x68] sm:$0xff]
  %v76 = vld [vmem:[%s0 + $0x70] sm:$0xff]
  %v77 = vld [vmem:[%s0 + $0x78] sm:$0xff]
  %v78 = vld [vmem:[%s1] sm:$0xff]
  %v79 = vld [vmem:[%s1 + $0x8] sm:$0xff]
  %v80 = vld [vmem:[%s1 + $0x10] sm:$0xff]
  %v81 = vld [vmem:[%s1 + $0x18] sm:$0xff]
  %v82 = vld [vmem:[%s1 + $0x20] sm:$0xff]
  %v83 = vld [vmem:[%s1 + $0x28] sm:$0xff]
  %v84 = vld [vmem:[%s1 + $0x30] sm:$0xff]
  %v85 = vld [vmem:[%s1 + $0x38] sm:$0xff]
  %v86 = vld [vmem:[%s1 + $0x40] sm:$0xff]
  %v87 = vld [vmem:[%s1 + $0x48] sm:$0xff]
  %v88 = vld [vmem:[%s1 + $0x50] sm:$0xff]
  %v89 = vld [vmem:[%s1 + $0x58] sm:$0xff]
  %v90 = vld [vmem:[%s1 + $0x60] sm:$0xff]
  %v91 = vld [vmem:[%s1 + $0x68] sm:$0xff]
  %v92 = vld [vmem:[%s1 + $0x70] sm:$0xff]
  %v93 = vld [vmem:[%s1 + $0x78] sm:$0xff]
  %94 = vmatpush.msra.mxu0 %v93
  %95 = vmatpush.msra.mxu0 %v92
  %96 = vmatpush.msra.mxu0 %v91
  %97 = vmatpush.msra.mxu0 %v90
  %98 = vmatpush.msra.mxu0 %v89
  %99 = vmatpush.msra.mxu0 %v88
  %100 = vmatpush.msra.mxu0 %v87
  %101 = vmatpush.msra.mxu0 %v86
  %102 = vmatpush.msra.mxu0 %v85
  %103 = vmatpush.msra.mxu0 %v84
  %104 = vmatpush.msra.mxu0 %v83
  %105 = vmatpush.msra.mxu0 %v82
  %106 = vmatpush.msra.mxu0 %v81
  %107 = vmatpush.msra.mxu0 %v80
  %108 = vmatpush.msra.mxu0 %v79
  %109 = vmatpush.msra.mxu0 %v78
  %110 = vmatmul.f32.gmra.mxu0 %v62
  %v111 = vpop.f32.mrf.mxu0
  %v112 = vadd.f32 0.0, %v111
  %113 = vmatmul.f32.gmra.mxu0 %v63
  %v114 = vpop.f32.mrf.mxu0
  %v115 = vadd.f32 0.0, %v114
  %116 = vmatmul.f32.gmra.mxu0 %v64
  %v117 = vpop.f32.mrf.mxu0
  %v118 = vadd.f32 0.0, %v117
  %119 = vmatmul.f32.gmra.mxu0 %v65
  %v120 = vpop.f32.mrf.mxu0
  %v121 = vadd.f32 0.0, %v120
  %122 = vmatmul.f32.gmra.mxu0 %v66
  %v123 = vpop.f32.mrf.mxu0
  %v124 = vadd.f32 0.0, %v123
  %125 = vmatmul.f32.gmra.mxu0 %v67
  %v126 = vpop.f32.mrf.mxu0
  %v127 = vadd.f32 0.0, %v126
  %128 = vmatmul.f32.gmra.mxu0 %v68
  %v129 = vpop.f32.mrf.mxu0
  %v130 = vadd.f32 0.0, %v129
  %131 = vmatmul.f32.gmra.mxu0 %v69
  %v132 = vpop.f32.mrf.mxu0
  %v133 = vadd.f32 0.0, %v132
  %134 = vmatmul.f32.gmra.mxu0 %v70
  %v135 = vpop.f32.mrf.mxu0
  %v136 = vadd.f32 0.0, %v135
  %137 = vmatmul.f32.gmra.mxu0 %v71
  %v138 = vpop.f32.mrf.mxu0
  %v139 = vadd.f32 0.0, %v138
  %140 = vmatmul.f32.gmra.mxu0 %v72
  %v141 = vpop.f32.mrf.mxu0
  %v142 = vadd.f32 0.0, %v141
  %143 = vmatmul.f32.gmra.mxu0 %v73
  %v144 = vpop.f32.mrf.mxu0
  %v145 = vadd.f32 0.0, %v144
  %146 = vmatmul.f32.gmra.mxu0 %v74
  %v147 = vpop.f32.mrf.mxu0
  %v148 = vadd.f32 0.0, %v147
  %149 = vmatmul.f32.gmra.mxu0 %v75
  %v150 = vpop.f32.mrf.mxu0
  %v151 = vadd.f32 0.0, %v150
  %152 = vmatmul.f32.gmra.mxu0 %v76
  %v153 = vpop.f32.mrf.mxu0
  %v154 = vadd.f32 0.0, %v153
  %155 = vmatmul.f32.gmra.mxu0 %v77
  %v156 = vpop.f32.mrf.mxu0
  %v157 = vadd.f32 0.0, %v156
  %158 = vdwg.mxu0
  %v159 = vadd.f32 %v46, %v112
  %v160 = vadd.f32 %v47, %v115
  %v161 = vadd.f32 %v48, %v118
  %v162 = vadd.f32 %v49, %v121
  %v163 = vadd.f32 %v50, %v124
  %v164 = vadd.f32 %v51, %v127
  %v165 = vadd.f32 %v52, %v130
  %v166 = vadd.f32 %v53, %v133
  %v167 = vadd.f32 %v54, %v136
  %v168 = vadd.f32 %v55, %v139
  %v169 = vadd.f32 %v56, %v142
  %v170 = vadd.f32 %v57, %v145
  %v171 = vadd.f32 %v58, %v148
  %v172 = vadd.f32 %v59, %v151
  %v173 = vadd.f32 %v60, %v154
  %v174 = vadd.f32 %v61, %v157
  %175 = vst [vmem:[#allocation2] sm:$0xff] %v159
  %176 = vst [vmem:[#allocation2 + $0x8] sm:$0xff] %v160
  %177 = vst [vmem:[#allocation2 + $0x10] sm:$0xff] %v161
  %178 = vst [vmem:[#allocation2 + $0x18] sm:$0xff] %v162
  %179 = vst [vmem:[#allocation2 + $0x20] sm:$0xff] %v163
  %180 = vst [vmem:[#allocation2 + $0x28] sm:$0xff] %v164
  %181 = vst [vmem:[#allocation2 + $0x30] sm:$0xff] %v165
  %182 = vst [vmem:[#allocation2 + $0x38] sm:$0xff] %v166
  %183 = vst [vmem:[#allocation2 + $0x40] sm:$0xff] %v167
  %184 = vst [vmem:[#allocation2 + $0x48] sm:$0xff] %v168
  %185 = vst [vmem:[#allocation2 + $0x50] sm:$0xff] %v169
  %186 = vst [vmem:[#allocation2 + $0x58] sm:$0xff] %v170
  %187 = vst [vmem:[#allocation2 + $0x60] sm:$0xff] %v171
  %188 = vst [vmem:[#allocation2 + $0x68] sm:$0xff] %v172
  %189 = vst [vmem:[#allocation2 + $0x70] sm:$0xff] %v173
  %190 = vst [vmem:[#allocation2 + $0x78] sm:$0xff] %v174
  // Predicated region
  $region34: #{basic_block_forward.3} parent=0 // pred_check
    %p191 = pneg %p26
  $region35: #{basic_block_forward.3} parent=0 // pred_check_branch
    %193 = sbr.rel (%p191) target = $region37
  $region36: #{basic_block_forward.3} parent=0 // pred_region
    %v194 = vld [vmem:[#allocation2] sm:$0xff]
    %v195 = vld [vmem:[#allocation2 + $0x8] sm:$0xff]
    %v196 = vld [vmem:[#allocation2 + $0x10] sm:$0xff]
    %v197 = vld [vmem:[#allocation2 + $0x18] sm:$0xff]
    %v198 = vld [vmem:[#allocation2 + $0x20] sm:$0xff]
    %v199 = vld [vmem:[#allocation2 + $0x28] sm:$0xff]
    %v200 = vld [vmem:[#allocation2 + $0x30] sm:$0xff]
    %v201 = vld [vmem:[#allocation2 + $0x38] sm:$0xff]
    %v202 = vld [vmem:[#allocation2 + $0x40] sm:$0xff]
    %v203 = vld [vmem:[#allocation2 + $0x48] sm:$0xff]
    %v204 = vld [vmem:[#allocation2 + $0x50] sm:$0xff]
    %v205 = vld [vmem:[#allocation2 + $0x58] sm:$0xff]
    %v206 = vld [vmem:[#allocation2 + $0x60] sm:$0xff]
    %v207 = vld [vmem:[#allocation2 + $0x68] sm:$0xff]
    %v208 = vld [vmem:[#allocation2 + $0x70] sm:$0xff]
    %v209 = vld [vmem:[#allocation2 + $0x78] sm:$0xff]
    %v210 = vld [vmem:[%s2] sm:$0x1]
    %v212 = vperm.slane %v210, 0
    %v214 = vmul.f32 %v194, %v212
    %v215 = vmul.f32 %v195, %v212
    %v216 = vmul.f32 %v196, %v212
    %v217 = vmul.f32 %v197, %v212
    %v218 = vmul.f32 %v198, %v212
    %v219 = vmul.f32 %v199, %v212
    %v220 = vmul.f32 %v200, %v212
    %v221 = vmul.f32 %v201, %v212
    %v222 = vmul.f32 %v202, %v212
    %v223 = vmul.f32 %v203, %v212
    %v224 = vmul.f32 %v204, %v212
    %v225 = vmul.f32 %v205, %v212
    %v226 = vmul.f32 %v206, %v212
    %v227 = vmul.f32 %v207, %v212
    %v228 = vmul.f32 %v208, %v212
    %v229 = vmul.f32 %v209, %v212
    %v230 = vld [vmem:[%s3] sm:$0x1]
    %v232 = vperm.slane %v230, 0
    %v234 = vadd.f32 %v214, %v232
    %v235 = vadd.f32 %v215, %v232
    %v236 = vadd.f32 %v216, %v232
    %v237 = vadd.f32 %v217, %v232
    %v238 = vadd.f32 %v218, %v232
    %v239 = vadd.f32 %v219, %v232
    %v240 = vadd.f32 %v220, %v232
    %v241 = vadd.f32 %v221, %v232
    %v242 = vadd.f32 %v222, %v232
    %v243 = vadd.f32 %v223, %v232
    %v244 = vadd.f32 %v224, %v232
    %v245 = vadd.f32 %v225, %v232
    %v246 = vadd.f32 %v226, %v232
    %v247 = vadd.f32 %v227, %v232
    %v248 = vadd.f32 %v228, %v232
    %v249 = vadd.f32 %v229, %v232
    %v250 = vld [vmem:[%s4] sm:$0xff]
    %v251 = vld [vmem:[%s4 + $0x8] sm:$0xff]
    %v252 = vld [vmem:[%s4 + $0x10] sm:$0xff]
    %v253 = vld [vmem:[%s4 + $0x18] sm:$0xff]
    %v254 = vld [vmem:[%s4 + $0x20] sm:$0xff]
    %v255 = vld [vmem:[%s4 + $0x28] sm:$0xff]
    %v256 = vld [vmem:[%s4 + $0x30] sm:$0xff]
    %v257 = vld [vmem:[%s4 + $0x38] sm:$0xff]
    %v258 = vld [vmem:[%s4 + $0x40] sm:$0xff]
    %v259 = vld [vmem:[%s4 + $0x48] sm:$0xff]
    %v260 = vld [vmem:[%s4 + $0x50] sm:$0xff]
    %v261 = vld [vmem:[%s4 + $0x58] sm:$0xff]
    %v262 = vld [vmem:[%s4 + $0x60] sm:$0xff]
    %v263 = vld [vmem:[%s4 + $0x68] sm:$0xff]
    %v264 = vld [vmem:[%s4 + $0x70] sm:$0xff]
    %v265 = vld [vmem:[%s4 + $0x78] sm:$0xff]
    %v266 = vld [vmem:[%s5] sm:$0xff]
    %v267 = vld [vmem:[%s5 + $0x8] sm:$0xff]
    %v268 = vld [vmem:[%s5 + $0x10] sm:$0xff]
    %v269 = vld [vmem:[%s5 + $0x18] sm:$0xff]
    %v270 = vld [vmem:[%s5 + $0x20] sm:$0xff]
    %v271 = vld [vmem:[%s5 + $0x28] sm:$0xff]
    %v272 = vld [vmem:[%s5 + $0x30] sm:$0xff]
    %v273 = vld [vmem:[%s5 + $0x38] sm:$0xff]
    %v274 = vld [vmem:[%s5 + $0x40] sm:$0xff]
    %v275 = vld [vmem:[%s5 + $0x48] sm:$0xff]
    %v276 = vld [vmem:[%s5 + $0x50] sm:$0xff]
    %v277 = vld [vmem:[%s5 + $0x58] sm:$0xff]
    %v278 = vld [vmem:[%s5 + $0x60] sm:$0xff]
    %v279 = vld [vmem:[%s5 + $0x68] sm:$0xff]
    %v280 = vld [vmem:[%s5 + $0x70] sm:$0xff]
    %v281 = vld [vmem:[%s5 + $0x78] sm:$0xff]
    %282 = vmatpush.msra.mxu0 %v281
    %283 = vmatpush.msra.mxu0 %v280
    %284 = vmatpush.msra.mxu0 %v279
    %285 = vmatpush.msra.mxu0 %v278
    %286 = vmatpush.msra.mxu0 %v277
    %287 = vmatpush.msra.mxu0 %v276
    %288 = vmatpush.msra.mxu0 %v275
    %289 = vmatpush.msra.mxu0 %v274
    %290 = vmatpush.msra.mxu0 %v273
    %291 = vmatpush.msra.mxu0 %v272
    %292 = vmatpush.msra.mxu0 %v271
    %293 = vmatpush.msra.mxu0 %v270
    %294 = vmatpush.msra.mxu0 %v269
    %295 = vmatpush.msra.mxu0 %v268
    %296 = vmatpush.msra.mxu0 %v267
    %297 = vmatpush.msra.mxu0 %v266
    %298 = vmatmul.f32.gmra.mxu0 %v250
    %v299 = vpop.f32.mrf.mxu0
    %v300 = vadd.f32 0.0, %v299
    %301 = vmatmul.f32.gmra.mxu0 %v251
    %v302 = vpop.f32.mrf.mxu0
    %v303 = vadd.f32 0.0, %v302
    %304 = vmatmul.f32.gmra.mxu0 %v252
    %v305 = vpop.f32.mrf.mxu0
    %v306 = vadd.f32 0.0, %v305
    %307 = vmatmul.f32.gmra.mxu0 %v253
    %v308 = vpop.f32.mrf.mxu0
    %v309 = vadd.f32 0.0, %v308
    %310 = vmatmul.f32.gmra.mxu0 %v254
    %v311 = vpop.f32.mrf.mxu0
    %v312 = vadd.f32 0.0, %v311
    %313 = vmatmul.f32.gmra.mxu0 %v255
    %v314 = vpop.f32.mrf.mxu0
    %v315 = vadd.f32 0.0, %v314
    %316 = vmatmul.f32.gmra.mxu0 %v256
    %v317 = vpop.f32.mrf.mxu0
    %v318 = vadd.f32 0.0, %v317
    %319 = vmatmul.f32.gmra.mxu0 %v257
    %v320 = vpop.f32.mrf.mxu0
    %v321 = vadd.f32 0.0, %v320
    %322 = vmatmul.f32.gmra.mxu0 %v258
    %v323 = vpop.f32.mrf.mxu0
    %v324 = vadd.f32 0.0, %v323
    %325 = vmatmul.f32.gmra.mxu0 %v259
    %v326 = vpop.f32.mrf.mxu0
    %v327 = vadd.f32 0.0, %v326
    %328 = vmatmul.f32.gmra.mxu0 %v260
    %v329 = vpop.f32.mrf.mxu0
    %v330 = vadd.f32 0.0, %v329
    %331 = vmatmul.f32.gmra.mxu0 %v261
    %v332 = vpop.f32.mrf.mxu0
    %v333 = vadd.f32 0.0, %v332
    %334 = vmatmul.f32.gmra.mxu0 %v262
    %v335 = vpop.f32.mrf.mxu0
    %v336 = vadd.f32 0.0, %v335
    %337 = vmatmul.f32.gmra.mxu0 %v263
    %v338 = vpop.f32.mrf.mxu0
    %v339 = vadd.f32 0.0, %v338
    %340 = vmatmul.f32.gmra.mxu0 %v264
    %v341 = vpop.f32.mrf.mxu0
    %v342 = vadd.f32 0.0, %v341
    %343 = vmatmul.f32.gmra.mxu0 %v265
    %v344 = vpop.f32.mrf.mxu0
    %v345 = vadd.f32 0.0, %v344
    %346 = vdwg.mxu0
    %v347 = vadd.f32 %v234, %v300
    %v348 = vadd.f32 %v235, %v303
    %v349 = vadd.f32 %v236, %v306
    %v350 = vadd.f32 %v237, %v309
    %v351 = vadd.f32 %v238, %v312
    %v352 = vadd.f32 %v239, %v315
    %v353 = vadd.f32 %v240, %v318
    %v354 = vadd.f32 %v241, %v321
    %v355 = vadd.f32 %v242, %v324
    %v356 = vadd.f32 %v243, %v327
    %v357 = vadd.f32 %v244, %v330
    %v358 = vadd.f32 %v245, %v333
    %v359 = vadd.f32 %v246, %v336
    %v360 = vadd.f32 %v247, %v339
    %v361 = vadd.f32 %v248, %v342
    %v362 = vadd.f32 %v249, %v345
    %v363 = vld [vmem:[%s6] sm:$0x1]
    %v365 = vperm.slane %v363, 0
    %v367 = vadd.f32 %v347, %v365
    %v368 = vadd.f32 %v348, %v365
    %v369 = vadd.f32 %v349, %v365
    %v370 = vadd.f32 %v350, %v365
    %v371 = vadd.f32 %v351, %v365
    %v372 = vadd.f32 %v352, %v365
    %v373 = vadd.f32 %v353, %v365
    %v374 = vadd.f32 %v354, %v365
    %v375 = vadd.f32 %v355, %v365
    %v376 = vadd.f32 %v356, %v365
    %v377 = vadd.f32 %v357, %v365
    %v378 = vadd.f32 %v358, %v365
    %v379 = vadd.f32 %v359, %v365
    %v380 = vadd.f32 %v360, %v365
    %v381 = vadd.f32 %v361, %v365
    %v382 = vadd.f32 %v362, %v365
    %v383 = vmax.f32 %v367, 0.0
    %v384 = vmax.f32 %v368, 0.0
    %v385 = vmax.f32 %v369, 0.0
    %v386 = vmax.f32 %v370, 0.0
    %v387 = vmax.f32 %v371, 0.0
    %v388 = vmax.f32 %v372, 0.0
    %v389 = vmax.f32 %v373, 0.0
    %v390 = vmax.f32 %v374, 0.0
    %v391 = vmax.f32 %v375, 0.0
    %v392 = vmax.f32 %v376, 0.0
    %v393 = vmax.f32 %v377, 0.0
    %v394 = vmax.f32 %v378, 0.0
    %v395 = vmax.f32 %v379, 0.0
    %v396 = vmax.f32 %v380, 0.0
    %v397 = vmax.f32 %v381, 0.0
    %v398 = vmax.f32 %v382, 0.0
    %399 = vst [vmem:[%s7] sm:$0xff] %v383
    %400 = vst [vmem:[%s7 + $0x8] sm:$0xff] %v384
    %401 = vst [vmem:[%s7 + $0x10] sm:$0xff] %v385
    %402 = vst [vmem:[%s7 + $0x18] sm:$0xff] %v386
    %403 = vst [vmem:[%s7 + $0x20] sm:$0xff] %v387
    %404 = vst [vmem:[%s7 + $0x28] sm:$0xff] %v388
    %405 = vst [vmem:[%s7 + $0x30] sm:$0xff] %v389
    %406 = vst [vmem:[%s7 + $0x38] sm:$0xff] %v390
    %407 = vst [vmem:[%s7 + $0x40] sm:$0xff] %v391
    %408 = vst [vmem:[%s7 + $0x48] sm:$0xff] %v392
    %409 = vst [vmem:[%s7 + $0x50] sm:$0xff] %v393
    %410 = vst [vmem:[%s7 + $0x58] sm:$0xff] %v394
    %411 = vst [vmem:[%s7 + $0x60] sm:$0xff] %v395
    %412 = vst [vmem:[%s7 + $0x68] sm:$0xff] %v396
    %413 = vst [vmem:[%s7 + $0x70] sm:$0xff] %v397
    %414 = vst [vmem:[%s7 + $0x78] sm:$0xff] %v398
  $region37: #{basic_block_forward.3} parent=0 // pred_fallthru
    _
  // Predicated region
  $region38: #{basic_block_forward.3} parent=0 // pred_check
    _
  $region39: #{basic_block_forward.3} parent=0 // pred_check_branch
    %416 = sbr.rel (0) target = $region41
  $region40: #{basic_block_forward.3} parent=0 // pred_region
    _
  $region41: #{basic_block_forward.3} parent=0 // pred_fallthru
    _
  // Predicated region
  $region42: #{basic_block_forward.3} parent=0 // pred_check
    _
  $region43: #{basic_block_forward.3} parent=0 // pred_check_branch
    %418 = sbr.rel (0) target = $region45
  $region44: #{basic_block_forward.3} parent=0 // pred_region
    _
  $region45: #{basic_block_forward.3} parent=0 // pred_fallthru
    _

</llo_original>
